<compile_context>
chip_gen: v7x
topology: tpu7x:2x2x1
jax: 0.10.0
libtpu: 0.0.40
codegen_flags: <defaults>
</compile_context>

<pallas_src>
import functools
import math

import jax
import jax.numpy as jnp
import numpy as np
from jax.experimental import pallas as pl
from jax.experimental.pallas import tpu as pltpu


def _round_up(n, m):
    return ((n + m - 1) // m) * m


# ---------------------------------------------------------------------------
# Kernel A: support1 = x @ W1   (row-tiled; W1 is tiny and kept whole in VMEM)
# ---------------------------------------------------------------------------
def _support_kernel(x_ref, w_ref, o_ref):
    o_ref[...] = jnp.dot(
        x_ref[...], w_ref[...], preferred_element_type=jnp.float32
    ).astype(o_ref.dtype)


# ---------------------------------------------------------------------------
# Kernel B: support2 = relu(adj @ support1 + b1) @ W2
#   Tiled reduction over adj columns with f32 VMEM accumulator; the k==last
#   finalize fuses bias + ReLU and the layer-2 support matmul.
# ---------------------------------------------------------------------------
def _layer1_kernel(adj_ref, s1_ref, b1_ref, w2_ref, o_ref, acc_ref):
    k = pl.program_id(1)

    @pl.when(k == 0)
    def _():
        acc_ref[...] = jnp.zeros_like(acc_ref)

    acc_ref[...] += jnp.dot(
        adj_ref[...], s1_ref[...], preferred_element_type=jnp.float32
    )

    @pl.when(k == pl.num_programs(1) - 1)
    def _():
        # TODO(synk): F.dropout(training=True) has no deterministic PyTorch-RNG
        # equivalent; eval-mode dropout (identity) is implemented here.
        h1 = jnp.maximum(acc_ref[...] + b1_ref[...], 0.0)  # bias + ReLU in f32
        o_ref[...] = jnp.dot(
            h1.astype(w2_ref.dtype), w2_ref[...], preferred_element_type=jnp.float32
        ).astype(o_ref.dtype)


# ---------------------------------------------------------------------------
# Kernel C: out = log_softmax(adj @ support2 + b2)   (padded classes masked)
# ---------------------------------------------------------------------------
def _layer2_kernel(adj_ref, s2_ref, b2_ref, o_ref, acc_ref, *, nclass):
    k = pl.program_id(1)

    @pl.when(k == 0)
    def _():
        acc_ref[...] = jnp.zeros_like(acc_ref)

    acc_ref[...] += jnp.dot(
        adj_ref[...], s2_ref[...], preferred_element_type=jnp.float32
    )

    @pl.when(k == pl.num_programs(1) - 1)
    def _():
        h2 = acc_ref[...] + b2_ref[...]
        # Exclude padded class columns from the logsumexp.
        col = jax.lax.broadcasted_iota(jnp.int32, h2.shape, 1)
        h2 = jnp.where(col < nclass, h2, jnp.float32(-1e30))
        m = jnp.max(h2, axis=1, keepdims=True)
        shifted = h2 - m
        lse = jnp.log(jnp.sum(jnp.exp(shifted), axis=1, keepdims=True))
        o_ref[...] = shifted - lse


def gcn_forward(
    x,
    adj,
    w1,
    b1,
    w2,
    b2,
    *,
    tm=128,
    tk=128,
    compute_dtype=jnp.float32,
    vmem_limit_bytes=48 * 1024 * 1024,
):
    n, nfeat = x.shape
    nhid = w1.shape[1]
    nclass = w2.shape[1]
    assert adj.shape == (n, n)
    assert n % tm == 0 and n % tk == 0, "N must be divisible by the tile sizes"

    hp = _round_up(nhid, 128)    # lane-pad hidden dim
    cp = _round_up(nclass, 128)  # lane-pad class dim

    f32 = jnp.float32
    # Zero-padded weights/biases: padded cols/rows contribute exactly 0.
    w1p = jnp.zeros((nfeat, hp), f32).at[:, :nhid].set(w1).astype(compute_dtype)
    w2p = jnp.zeros((hp, cp), f32).at[:nhid, :nclass].set(w2).astype(compute_dtype)
    b1p = jnp.zeros((1, hp), f32).at[:, :nhid].set(b1.reshape(1, -1))
    b2p = jnp.zeros((1, cp), f32).at[:, :nclass].set(b2.reshape(1, -1))

    # Casting MXU inputs (adj dominates HBM traffic) in the wrapper halves DMA
    # bytes when compute_dtype=bfloat16; accumulation/epilogue stay f32.
    xc = x.astype(compute_dtype)
    adjc = adj.astype(compute_dtype)

    cparams_1d = pltpu.CompilerParams(
        dimension_semantics=("parallel",), vmem_limit_bytes=vmem_limit_bytes
    )
    cparams_2d = pltpu.CompilerParams(
        dimension_semantics=("parallel", "arbitrary"),
        vmem_limit_bytes=vmem_limit_bytes,
    )

    # ---- pass 1: support1 = x @ W1 (computed exactly once per row tile) ----
    support1 = pl.pallas_call(
        _support_kernel,
        out_shape=jax.ShapeDtypeStruct((n, hp), compute_dtype),
        grid_spec=pltpu.PrefetchScalarGridSpec(
            num_scalar_prefetch=0,
            grid=(n // tm,),
            in_specs=[
                pl.BlockSpec((tm, nfeat), lambda i: (i, 0)),  # x row tile
                pl.BlockSpec((nfeat, hp), lambda i: (0, 0)),  # W1 (whole, tiny)
            ],
            out_specs=pl.BlockSpec((tm, hp), lambda i: (i, 0)),
        ),
        compiler_params=cparams_1d,
    )(xc, w1p)

    # ---- pass 2: support2 = relu(adj @ support1 + b1) @ W2 ----
    support2 = pl.pallas_call(
        _layer1_kernel,
        out_shape=jax.ShapeDtypeStruct((n, cp), compute_dtype),
        grid_spec=pltpu.PrefetchScalarGridSpec(
            num_scalar_prefetch=0,
            grid=(n // tm, n // tk),
            in_specs=[
                pl.BlockSpec((tm, tk), lambda i, k: (i, k)),  # adj tile
                pl.BlockSpec((tk, hp), lambda i, k: (k, 0)),  # support1 tile
                pl.BlockSpec((1, hp), lambda i, k: (0, 0)),   # b1 (whole)
                pl.BlockSpec((hp, cp), lambda i, k: (0, 0)),  # W2 (whole, tiny)
            ],
            out_specs=pl.BlockSpec((tm, cp), lambda i, k: (i, 0)),
            scratch_shapes=[pltpu.VMEM((tm, hp), jnp.float32)],
        ),
        compiler_params=cparams_2d,
    )(adjc, support1, b1p, w2p)

    # ---- pass 3: out = log_softmax(adj @ support2 + b2) ----
    out_padded = pl.pallas_call(
        functools.partial(_layer2_kernel, nclass=nclass),
        out_shape=jax.ShapeDtypeStruct((n, cp), jnp.float32),
        grid_spec=pltpu.PrefetchScalarGridSpec(
            num_scalar_prefetch=0,
            grid=(n // tm, n // tk),
            in_specs=[
                pl.BlockSpec((tm, tk), lambda i, k: (i, k)),  # adj tile
                pl.BlockSpec((tk, cp), lambda i, k: (k, 0)),  # support2 tile
                pl.BlockSpec((1, cp), lambda i, k: (0, 0)),   # b2 (whole)
            ],
            out_specs=pl.BlockSpec((tm, cp), lambda i, k: (i, 0)),
            scratch_shapes=[pltpu.VMEM((tm, cp), jnp.float32)],
        ),
        compiler_params=cparams_2d,
    )(adjc, support2, b2p)

    # Drop the lane padding (cheap XLA slice); kernel stores stay lane-dense.
    return out_padded[:, :nclass]


def init_gc_params(key, in_features, out_features):
    """Matches GraphConvolution.reset_parameters(): U(-stdv, stdv), stdv=1/sqrt(out)."""
    stdv = 1.0 / math.sqrt(out_features)
    kw, kb = jax.random.split(key)
    w = jax.random.uniform(kw, (in_features, out_features), jnp.float32, -stdv, stdv)
    b = jax.random.uniform(kb, (out_features,), jnp.float32, -stdv, stdv)
    return w, b


def reference_forward(x, adj, w1, b1, w2, b2):
    h1 = jnp.maximum(adj @ (x @ w1) + b1[None, :], 0.0)
    h2 = adj @ (h1 @ w2) + b2[None, :]
    return jax.nn.log_softmax(h2, axis=1)


if __name__ == "__main__":
    # Small, GCN-consistent shapes: N nodes, nfeat -> nhid -> nclass.
    # N=256 with tm=tk=128 exercises the 2x2 tiled grid + accumulator path.
    N, nfeat, nhid, nclass = 256, 32, 32, 16

    key = jax.random.PRNGKey(0)
    kx, kadj, k1, k2 = jax.random.split(key, 4)

    # Node features.
    x = jax.random.normal(kx, (N, nfeat), jnp.float32)

    # Deterministic symmetric normalized adjacency with self-loops.
    a = (jax.random.uniform(kadj, (N, N)) < 0.1).astype(jnp.float32)
    a = jnp.maximum(a, a.T) + jnp.eye(N, dtype=jnp.float32)
    deg_inv_sqrt = 1.0 / jnp.sqrt(jnp.sum(a, axis=1))
    adj = a * deg_inv_sqrt[:, None] * deg_inv_sqrt[None, :]

    # Parameters (deterministic, matching the module's init scheme).
    w1, b1 = init_gc_params(k1, nfeat, nhid)
    w2, b2 = init_gc_params(k2, nhid, nclass)

    ref = reference_forward(x, adj, w1, b1, w2, b2)

    # f32 MXU-input path (tight tolerance).
    out_f32 = jax.block_until_ready(
        gcn_forward(x, adj, w1, b1, w2, b2, tm=128, tk=128,
                    compute_dtype=jnp.float32)
    )
    np.testing.assert_allclose(np.asarray(out_f32), np.asarray(ref),
                               rtol=1e-4, atol=1e-4)

    # bf16 MXU-input path (f32 accumulation/epilogue; bf16-appropriate tolerance).
    out_bf16 = jax.block_until_ready(
        gcn_forward(x, adj, w1, b1, w2, b2, tm=128, tk=128,
                    compute_dtype=jnp.bfloat16)
    )
    np.testing.assert_allclose(np.asarray(out_bf16), np.asarray(ref),
                               rtol=5e-2, atol=5e-2)

    print("KERNEL_OK")
</pallas_src>

<mosaic_0001>
module attributes {stable_mosaic.version = 11 : i64} {
  func.func @_support_kernel(%arg0: i32, %arg1: memref<128x32xf32, #tpu.memory_space<vmem>>, %arg2: memref<32x128xf32, #tpu.memory_space<vmem>>, %arg3: memref<128x128xf32, #tpu.memory_space<vmem>>) attributes {dimension_semantics = [#tpu.dimension_semantics<parallel>], iteration_bounds = array<i64: 2>, scalar_prefetch = 0 : i64, scratch_operands = 0 : i64, tpu.core_type = #tpu.core_type<tc>, window_params = [{transform_indices = @transform_0, window_bounds = array<i64: 128, 32>}, {pipeline_mode = #tpu.pipeline_mode<synchronous>, transform_indices = @transform_1, window_bounds = array<i64: 32, 128>}, {transform_indices = @transform_2, window_bounds = array<i64: 128, 128>}]} {
    %c0 = arith.constant 0 : index
    %c0_0 = arith.constant 0 : index
    %0 = vector.load %arg1[%c0, %c0_0] : memref<128x32xf32, #tpu.memory_space<vmem>>, vector<128x32xf32>
    %c0_1 = arith.constant 0 : index
    %c0_2 = arith.constant 0 : index
    %1 = vector.load %arg2[%c0_1, %c0_2] : memref<32x128xf32, #tpu.memory_space<vmem>>, vector<32x128xf32>
    %cst = arith.constant dense<0.000000e+00> : vector<128x128xf32>
    %2 = tpu.matmul %0, %1, %cst {dimension_numbers = #tpu.dot_dimension_numbers<[1], [0], [0], [1], [0, 0, 1, 1], [], []>} : vector<128x32xf32>, vector<32x128xf32>, vector<128x128xf32> -> vector<128x128xf32>
    %c0_3 = arith.constant 0 : index
    %c0_4 = arith.constant 0 : index
    %3 = vector.load %arg3[%c0_3, %c0_4] : memref<128x128xf32, #tpu.memory_space<vmem>>, vector<128x128xf32>
    tpu.vector_store %arg3[%c0_3, %c0_4], %2 {strides = array<i32>} : memref<128x128xf32, #tpu.memory_space<vmem>>, vector<128x128xf32>,
    return
  }
  func.func @transform_0(%arg0: i32) -> (i32, i32) {
    %c0_i32 = arith.constant 0 : i32
    %c0_i32_0 = arith.constant 0 : i32
    return %arg0, %c0_i32 : i32, i32
  }
  func.func @transform_1(%arg0: i32) -> (i32, i32) {
    %c0_i32 = arith.constant 0 : i32
    %c0_i32_0 = arith.constant 0 : i32
    %c0_i32_1 = arith.constant 0 : i32
    return %c0_i32, %c0_i32_0 : i32, i32
  }
  func.func @transform_2(%arg0: i32) -> (i32, i32) {
    %c0_i32 = arith.constant 0 : i32
    %c0_i32_0 = arith.constant 0 : i32
    return %arg0, %c0_i32 : i32, i32
  }
}

</mosaic_0001>

<llo_original>
// kernel: tpu_custom_call.1
$region0: #{tpu_custom_call.1}
  #allocation0 [shape = 'u32[]', space=smem, size = 0x4, offset = 0x4, fixed_abs, tag = 'smem constant byte address 0x4 - core index']
  #allocation1 [shape = 'u32[144,128]{1,0:T(1,128)}', space=vmem, size = 0x12000, scoped, tag = 'internal scratch']
  %s0 = inlined_call_operand.vmem [shape: f32[256,32], index: 0, kind: input, shape index: {}]
  %s1 = inlined_call_operand.vmem [shape: f32[32,128], index: 1, kind: input, shape index: {}]
  %s2 = inlined_call_operand.hbm [shape: f32[256,128], index: 2, kind: output, shape index: {}]
  %s3 = sld [smem:[#allocation0]]
  $region41: #{tpu_custom_call.1} parent=0
    _
  %s5 = ssub.s32 1, %s3
  %s6 = scalar_select 0, %s5, %s3
  $region1: #{tpu_custom_call.1} parent=0
    #allocation2 [shape = 'u8[131072]{0}', space=vmem, size = 0x20000, scoped, tag = 'output window, operand 0']
    #allocation3 [shape = 's32[2]{0}', space=sflag, size = 0x8, scoped, tag = 'scoped memory for tpu_custom_call.1']
    %7 = vsyncpa [#allocation3], 0
    %s8 = scalar_lea.sflag [#allocation3], 1
    %9 = vsyncpa %s8, 0
    loop: start=0, step=1, limit=4
    $region2: #{tpu_custom_call.1} parent=1 // loop_pre_header
      _
    $region3: #{tpu_custom_call.1} parent=1 // loop_header
      %s11 = sphi 0, %s15
      %p12 = scmp.ge.s32.totalorder %s11, 4
      %s21 = sphi 0, %s23
      %s24 = sphi 0, %s21
      %s25 = sphi 0, %s24
      %s41 = sphi 0, %s25
      %s45 = sphi 0, %s45
      %s47 = sphi 0, %s45
      %s48 = sphi 0, %s47
      %s62 = sphi 0, %s48
      %s68 = sphi 0, %s70
      %s71 = sphi 0, %s68
      %s72 = sphi 0, %s71
      %s88 = sphi 0, %s72
    $region4: #{tpu_custom_call.1} parent=1 // loop_header_branch
      %14 = sbr.rel (%p12) target = $region8
    $region5: #{tpu_custom_call.1} parent=1 // loop_body
      %s16 = ssub.s32 %s11, 1
      %s17 = ssub.s32 %s11, 2
      %s18 = sadd.s32 %s11, 1
      %s19 = ssub.s32 %s11, %s18
      %p20 = scmp.eq.s32.totalorder %s19, 0
      %s22 = sadd.s32 %s21, 1
      %s23 = scalar_select %p20, %s21, %s22
      %p26 = pneg %p20
      %p27 = scmp.eq.s32.totalorder %s11, 1
      %p28 = por %p26, %p27
      %p29 = scmp.ne.s32.totalorder %s21, %s24
      %p30 = scmp.eq.s32.totalorder %s11, 0
      %p31 = por %p29, %p30
      %p32 = scmp.ne.s32.totalorder %s21, %s24
      %p33 = scmp.eq.s32.totalorder %s16, 1
      %p34 = por %p32, %p33
      %p35 = scmp.ne.s32.totalorder %s24, %s25
      %p36 = scmp.eq.s32.totalorder %s16, 0
      %p37 = por %p35, %p36
      %p38 = scmp.ne.s32.totalorder %s24, %s25
      %p39 = scmp.eq.s32.totalorder %s17, 1
      %p40 = por %p38, %p39
      %p42 = scmp.ne.s32.totalorder %s25, %s41
      %p43 = scmp.eq.s32.totalorder %s17, 0
      %p44 = por %p42, %p43
      %s46 = sadd.s32 %s45, 1
      %p49 = scmp.eq.s32.totalorder %s11, 1
      %p50 = scmp.ne.s32.totalorder %s45, %s47
      %p51 = scmp.eq.s32.totalorder %s11, 0
      %p52 = por %p50, %p51
      %p53 = scmp.ne.s32.totalorder %s45, %s47
      %p54 = scmp.eq.s32.totalorder %s16, 1
      %p55 = por %p53, %p54
      %p56 = scmp.ne.s32.totalorder %s47, %s48
      %p57 = scmp.eq.s32.totalorder %s16, 0
      %p58 = por %p56, %p57
      %p59 = scmp.ne.s32.totalorder %s47, %s48
      %p60 = scmp.eq.s32.totalorder %s17, 1
      %p61 = por %p59, %p60
      %p63 = scmp.ne.s32.totalorder %s48, %s62
      %p64 = scmp.eq.s32.totalorder %s17, 0
      %p65 = por %p63, %p64
      %s66 = ssub.s32 %s11, %s18
      %p67 = scmp.eq.s32.totalorder %s66, 0
      %s69 = sadd.s32 %s68, 1
      %s70 = scalar_select %p67, %s68, %s69
      %p73 = pneg %p67
      %p74 = scmp.eq.s32.totalorder %s11, 1
      %p75 = por %p73, %p74
      %p76 = scmp.ne.s32.totalorder %s68, %s71
      %p77 = scmp.eq.s32.totalorder %s11, 0
      %p78 = por %p76, %p77
      %p79 = scmp.ne.s32.totalorder %s68, %s71
      %p80 = scmp.eq.s32.totalorder %s16, 1
      %p81 = por %p79, %p80
      %p82 = scmp.ne.s32.totalorder %s71, %s72
      %p83 = scmp.eq.s32.totalorder %s16, 0
      %p84 = por %p82, %p83
      %p85 = scmp.ne.s32.totalorder %s71, %s72
      %p86 = scmp.eq.s32.totalorder %s17, 1
      %p87 = por %p85, %p86
      %p89 = scmp.ne.s32.totalorder %s72, %s88
      %p90 = scmp.eq.s32.totalorder %s17, 0
      %p91 = por %p89, %p90
      %p92 = scmp.le.s32.totalorder 1, %s11
      %p93 = scmp.lt.s32.totalorder %s11, 3
      %p94 = pnand %p92, %p93
      %p95 = pneg %p94
      // Predicated region
      $region9: #{tpu_custom_call.1} parent=5 // pred_check
        _
      $region10: #{tpu_custom_call.1} parent=5 // pred_check_branch
        %97 = sbr.rel (%p94) target = $region12
      $region11: #{tpu_custom_call.1} parent=5 // pred_region
        %s98 = ssub.s32 %s11, 1
        // Predicated region
        $region13: #{tpu_custom_call.1} parent=11 // pred_check
          %p99 = pneg %p58
        $region14: #{tpu_custom_call.1} parent=11 // pred_check_branch
          %101 = sbr.rel (%p99) target = $region16
        $region15: #{tpu_custom_call.1} parent=11 // pred_region
          _
        $region16: #{tpu_custom_call.1} parent=11 // pred_fallthru
          _
      $region12: #{tpu_custom_call.1} parent=5 // pred_fallthru
        _
      %p102 = scmp.lt.s32.totalorder %s11, 2
      // Predicated region
      $region17: #{tpu_custom_call.1} parent=5 // pred_check
        %p103 = pneg %p102
      $region18: #{tpu_custom_call.1} parent=5 // pred_check_branch
        %105 = sbr.rel (%p103) target = $region20
      $region19: #{tpu_custom_call.1} parent=5 // pred_region
        // Predicated region
        $region21: #{tpu_custom_call.1} parent=19 // pred_check
          %p106 = pneg %p31
        $region22: #{tpu_custom_call.1} parent=19 // pred_check_branch
          %108 = sbr.rel (%p106) target = $region24
        $region23: #{tpu_custom_call.1} parent=19 // pred_region
          %s109 = smul.u32 16, %s11
          %p110 = scmp.lt.s32.totalorder %s109, 31
          %s111 = scalar_select %p110, %s109, 31
          %s112 = smul.addr %s111, 8
          %s113 = scalar_lea.vmem %s0, %s112
          %s114 = smul.u32 16, %s11
        $region24: #{tpu_custom_call.1} parent=19 // pred_fallthru
          _
      $region20: #{tpu_custom_call.1} parent=5 // pred_fallthru
        _
      %p115 = scmp.le.s32.totalorder 1, %s11
      %p116 = scmp.lt.s32.totalorder %s11, 3
      %p117 = pnand %p115, %p116
      %p118 = pneg %p117
      // Predicated region
      $region25: #{tpu_custom_call.1} parent=5 // pred_check
        _
      $region26: #{tpu_custom_call.1} parent=5 // pred_check_branch
        %120 = sbr.rel (%p117) target = $region28
      $region27: #{tpu_custom_call.1} parent=5 // pred_region
        %s121 = ssub.s32 %s11, 1
        %s122 = smul.u32 16, %s16
        %p123 = scmp.lt.s32.totalorder %s122, 31
        %s124 = scalar_select %p123, %s122, 31
        %s125 = smul.addr %s124, 8
        %s126 = scalar_lea.vmem %s0, %s125
        %p127 = pneg %p37
        %p128 = pneg %p34
        %p129 = pneg %p58
        %p130 = pneg %p55
        %p131 = pneg %p84
        %p132 = pneg %p81
        %s133 = sand.u32 %s71, 1
        %s134 = scalar_lea.sflag [#allocation3], %s133
        %s135 = sand.u32 %s71, 1
        %s136 = smul.addr %s135, 128
        %s137 = scalar_lea.vmem [#allocation2], %s136
        %s138 = smul.u32 16, %s16
        %p139 = scmp.lt.s32.totalorder %s138, 31
        %s140 = scalar_select %p139, %s138, 31
        %s141 = smul.addr %s140, 8
        %s142 = scalar_lea.vmem %s0, %s141
        %s143 = smul.u32 16, %s16
        %s144 = smul.u32 16, %s16
        %v145 = vld [vmem:[%s142] sm:$0xff]
        %v146 = vld [vmem:[%s142 + $0x8] sm:$0xff]
        %v147 = vld [vmem:[%s142 + $0x10] sm:$0xff]
        %v148 = vld [vmem:[%s142 + $0x18] sm:$0xff]
        %v149 = vld [vmem:[%s142 + $0x20] sm:$0xff]
        %v150 = vld [vmem:[%s142 + $0x28] sm:$0xff]
        %v151 = vld [vmem:[%s142 + $0x30] sm:$0xff]
        %v152 = vld [vmem:[%s142 + $0x38] sm:$0xff]
        %v153 = vld [vmem:[%s142 + $0x40] sm:$0xff]
        %v154 = vld [vmem:[%s142 + $0x48] sm:$0xff]
        %v155 = vld [vmem:[%s142 + $0x50] sm:$0xff]
        %v156 = vld [vmem:[%s142 + $0x58] sm:$0xff]
        %v157 = vld [vmem:[%s142 + $0x60] sm:$0xff]
        %v158 = vld [vmem:[%s142 + $0x68] sm:$0xff]
        %v159 = vld [vmem:[%s142 + $0x70] sm:$0xff]
        %v160 = vld [vmem:[%s142 + $0x78] sm:$0xff]
        %v161 = vld [vmem:[%s1] sm:$0xff]
        %v162 = vld [vmem:[%s1 + $0x8] sm:$0xff]
        %v163 = vld [vmem:[%s1 + $0x10] sm:$0xff]
        %v164 = vld [vmem:[%s1 + $0x18] sm:$0xff]
        %vm165 = vcmask 261120
        %v167 = vsel %vm165, %v145, 0
        %v170 = vsel %vm165, %v146, 0
        %v173 = vsel %vm165, %v147, 0
        %v176 = vsel %vm165, %v148, 0
        %v179 = vsel %vm165, %v149, 0
        %v182 = vsel %vm165, %v150, 0
        %v185 = vsel %vm165, %v151, 0
        %v188 = vsel %vm165, %v152, 0
        %v191 = vsel %vm165, %v153, 0
        %v194 = vsel %vm165, %v154, 0
        %v197 = vsel %vm165, %v155, 0
        %v200 = vsel %vm165, %v156, 0
        %v203 = vsel %vm165, %v157, 0
        %v206 = vsel %vm165, %v158, 0
        %v209 = vsel %vm165, %v159, 0
        %v212 = vsel %vm165, %v160, 0
        %214 = vmatprep.subr.mxu0 0.0
        %215 = vmatpush1.msra.mxu0 %v161
        %216 = vmatprep.subr.mxu0 0.0
        %217 = vmatpush1.msra.mxu0 %v162
        %218 = vmatprep.subr.mxu0 0.0
        %219 = vmatpush1.msra.mxu0 %v163
        %220 = vmatprep.subr.mxu0 0.0
        %221 = vmatpush1.msra.mxu0 %v164
        %222 = vmatprep.subr.mxu0 0.0
        %223 = vmatpush1.msra.mxu0 0.0
        %224 = vmatprep.subr.mxu0 0.0
        %225 = vmatpush1.msra.mxu0 0.0
        %226 = vmatprep.subr.mxu0 0.0
        %227 = vmatpush1.msra.mxu0 0.0
        %228 = vmatprep.subr.mxu0 0.0
        %229 = vmatpush1.msra.mxu0 0.0
        %230 = vmatprep.subr.mxu0 0.0
        %231 = vmatpush1.msra.mxu0 0.0
        %232 = vmatprep.subr.mxu0 0.0
        %233 = vmatpush1.msra.mxu0 0.0
        %234 = vmatprep.subr.mxu0 0.0
        %235 = vmatpush1.msra.mxu0 0.0
        %236 = vmatprep.subr.mxu0 0.0
        %237 = vmatpush1.msra.mxu0 0.0
        %238 = vmatprep.subr.mxu0 0.0
        %239 = vmatpush1.msra.mxu0 0.0
        %240 = vmatprep.subr.mxu0 0.0
        %241 = vmatpush1.msra.mxu0 0.0
        %242 = vmatprep.subr.mxu0 0.0
        %243 = vmatpush1.msra.mxu0 0.0
        %244 = vmatprep.subr.mxu0 0.0
        %245 = vmatpush1.msra.mxu0 0.0
        %246 = vmatprep.subr.mxu0 0.0
        %247 = vmatpush1.msra.mxu0 0.0
        %248 = vmatprep.subr.mxu0 0.0
        %249 = vmatpush1.msra.mxu0 0.0
        %250 = vmatprep.subr.mxu0 0.0
        %251 = vmatpush1.msra.mxu0 0.0
        %252 = vmatprep.subr.mxu0 0.0
        %253 = vmatpush1.msra.mxu0 0.0
        %254 = vmatprep.subr.mxu0 0.0
        %255 = vmatpush1.msra.mxu0 0.0
        %256 = vmatprep.subr.mxu0 0.0
        %257 = vmatpush1.msra.mxu0 0.0
        %258 = vmatprep.subr.mxu0 0.0
        %259 = vmatpush1.msra.mxu0 0.0
        %260 = vmatprep.subr.mxu0 0.0
        %261 = vmatpush1.msra.mxu0 0.0
        %262 = vmatprep.subr.mxu0 0.0
        %263 = vmatpush1.msra.mxu0 0.0
        %264 = vmatprep.subr.mxu0 0.0
        %265 = vmatpush1.msra.mxu0 0.0
        %266 = vmatprep.subr.mxu0 0.0
        %267 = vmatpush1.msra.mxu0 0.0
        %268 = vmatprep.subr.mxu0 0.0
        %269 = vmatpush1.msra.mxu0 0.0
        %270 = vmatprep.subr.mxu0 0.0
        %271 = vmatpush1.msra.mxu0 0.0
        %272 = vmatprep.subr.mxu0 0.0
        %273 = vmatpush1.msra.mxu0 0.0
        %274 = vmatprep.subr.mxu0 0.0
        %275 = vmatpush1.msra.mxu0 0.0
        %276 = vmatprep.subr.mxu0 0.0
        %277 = vmatpush1.msra.mxu0 0.0
        %278 = vmatprep.mubr.f32.mxu0 0.0
        %279 = vmatmul.mubr.f32.gmra.mrb[0].mxu0 %v167
        %v280 = vpop.f32.mrb[0].mxu0
        %v281 = vadd.f32 0.0, %v280
        %v282 = vpop.f32.mrb[0].mxu0
        %283 = vmatprep.mubr.f32.mxu0 0.0
        %284 = vmatmul.mubr.f32.gmra.mrb[0].mxu0 %v170
        %v285 = vpop.f32.mrb[0].mxu0
        %v286 = vadd.f32 0.0, %v285
        %v287 = vpop.f32.mrb[0].mxu0
        %288 = vmatprep.mubr.f32.mxu0 0.0
        %289 = vmatmul.mubr.f32.gmra.mrb[0].mxu0 %v173
        %v290 = vpop.f32.mrb[0].mxu0
        %v291 = vadd.f32 0.0, %v290
        %v292 = vpop.f32.mrb[0].mxu0
        %293 = vmatprep.mubr.f32.mxu0 0.0
        %294 = vmatmul.mubr.f32.gmra.mrb[0].mxu0 %v176
        %v295 = vpop.f32.mrb[0].mxu0
        %v296 = vadd.f32 0.0, %v295
        %v297 = vpop.f32.mrb[0].mxu0
        %298 = vmatprep.mubr.f32.mxu0 0.0
        %299 = vmatmul.mubr.f32.gmra.mrb[0].mxu0 %v179
        %v300 = vpop.f32.mrb[0].mxu0
        %v301 = vadd.f32 0.0, %v300
        %v302 = vpop.f32.mrb[0].mxu0
        %303 = vmatprep.mubr.f32.mxu0 0.0
        %304 = vmatmul.mubr.f32.gmra.mrb[0].mxu0 %v182
        %v305 = vpop.f32.mrb[0].mxu0
        %v306 = vadd.f32 0.0, %v305
        %v307 = vpop.f32.mrb[0].mxu0
        %308 = vmatprep.mubr.f32.mxu0 0.0
        %309 = vmatmul.mubr.f32.gmra.mrb[0].mxu0 %v185
        %v310 = vpop.f32.mrb[0].mxu0
        %v311 = vadd.f32 0.0, %v310
        %v312 = vpop.f32.mrb[0].mxu0
        %313 = vmatprep.mubr.f32.mxu0 0.0
        %314 = vmatmul.mubr.f32.gmra.mrb[0].mxu0 %v188
        %v315 = vpop.f32.mrb[0].mxu0
        %v316 = vadd.f32 0.0, %v315
        %v317 = vpop.f32.mrb[0].mxu0
        %318 = vmatprep.mubr.f32.mxu0 0.0
        %319 = vmatmul.mubr.f32.gmra.mrb[0].mxu0 %v191
        %v320 = vpop.f32.mrb[0].mxu0
        %v321 = vadd.f32 0.0, %v320
        %v322 = vpop.f32.mrb[0].mxu0
        %323 = vmatprep.mubr.f32.mxu0 0.0
        %324 = vmatmul.mubr.f32.gmra.mrb[0].mxu0 %v194
        %v325 = vpop.f32.mrb[0].mxu0
        %v326 = vadd.f32 0.0, %v325
        %v327 = vpop.f32.mrb[0].mxu0
        %328 = vmatprep.mubr.f32.mxu0 0.0
        %329 = vmatmul.mubr.f32.gmra.mrb[0].mxu0 %v197
        %v330 = vpop.f32.mrb[0].mxu0
        %v331 = vadd.f32 0.0, %v330
        %v332 = vpop.f32.mrb[0].mxu0
        %333 = vmatprep.mubr.f32.mxu0 0.0
        %334 = vmatmul.mubr.f32.gmra.mrb[0].mxu0 %v200
        %v335 = vpop.f32.mrb[0].mxu0
        %v336 = vadd.f32 0.0, %v335
        %v337 = vpop.f32.mrb[0].mxu0
        %338 = vmatprep.mubr.f32.mxu0 0.0
        %339 = vmatmul.mubr.f32.gmra.mrb[0].mxu0 %v203
        %v340 = vpop.f32.mrb[0].mxu0
        %v341 = vadd.f32 0.0, %v340
        %v342 = vpop.f32.mrb[0].mxu0
        %343 = vmatprep.mubr.f32.mxu0 0.0
        %344 = vmatmul.mubr.f32.gmra.mrb[0].mxu0 %v206
        %v345 = vpop.f32.mrb[0].mxu0
        %v346 = vadd.f32 0.0, %v345
        %v347 = vpop.f32.mrb[0].mxu0
        %348 = vmatprep.mubr.f32.mxu0 0.0
        %349 = vmatmul.mubr.f32.gmra.mrb[0].mxu0 %v209
        %v350 = vpop.f32.mrb[0].mxu0
        %v351 = vadd.f32 0.0, %v350
        %v352 = vpop.f32.mrb[0].mxu0
        %353 = vmatprep.mubr.f32.mxu0 0.0
        %354 = vmatmul.mubr.f32.gmra.mrb[0].mxu0 %v212
        %v355 = vpop.f32.mrb[0].mxu0
        %v356 = vadd.f32 0.0, %v355
        %v357 = vpop.f32.mrb[0].mxu0
        %358 = vdwg.mxu0
        %359 = vst [vmem:[%s137] sm:$0xff] %v281
        %360 = vst [vmem:[%s137 + $0x8] sm:$0xff] %v286
        %361 = vst [vmem:[%s137 + $0x10] sm:$0xff] %v291
        %362 = vst [vmem:[%s137 + $0x18] sm:$0xff] %v296
        %363 = vst [vmem:[%s137 + $0x20] sm:$0xff] %v301
        %364 = vst [vmem:[%s137 + $0x28] sm:$0xff] %v306
        %365 = vst [vmem:[%s137 + $0x30] sm:$0xff] %v311
        %366 = vst [vmem:[%s137 + $0x38] sm:$0xff] %v316
        %367 = vst [vmem:[%s137 + $0x40] sm:$0xff] %v321
        %368 = vst [vmem:[%s137 + $0x48] sm:$0xff] %v326
        %369 = vst [vmem:[%s137 + $0x50] sm:$0xff] %v331
        %370 = vst [vmem:[%s137 + $0x58] sm:$0xff] %v336
        %371 = vst [vmem:[%s137 + $0x60] sm:$0xff] %v341
        %372 = vst [vmem:[%s137 + $0x68] sm:$0xff] %v346
        %373 = vst [vmem:[%s137 + $0x70] sm:$0xff] %v351
        %374 = vst [vmem:[%s137 + $0x78] sm:$0xff] %v356
        %s375 = sand.u32 %s71, 1
        %s376 = scalar_lea.sflag [#allocation3], %s375
        %s377 = sand.u32 %s71, 1
        %s378 = smul.addr %s377, 128
        %s379 = scalar_lea.vmem [#allocation2], %s378
        // Predicated region
        $region29: #{tpu_custom_call.1} parent=27 // pred_check
          %p380 = pneg %p81
        $region30: #{tpu_custom_call.1} parent=27 // pred_check_branch
          %382 = sbr.rel (%p380) target = $region32
        $region31: #{tpu_custom_call.1} parent=27 // pred_region
          %s383 = smul.u32 16, %s16
          %s385 = ssub.s32 2048, 2048
          %386 = vsyncadd %s376, %s385
          %s387 = smul.addr %s383, 128
          %s388 = scalar_lea.hbm %s2, %s387
          %s389 = sshll.u32 %s379, 4
          %s390 = int_to_ptr.vmem [resolvable:$true] %s389
          %395 = dma.vmem_to_hbm [thread:$0]  %s390, 2048, %s388, %s376, 128, 128, 8
        $region32: #{tpu_custom_call.1} parent=27 // pred_fallthru
          _
      $region28: #{tpu_custom_call.1} parent=5 // pred_fallthru
        _
      %p396 = scmp.le.s32.totalorder 2, %s11
      // Predicated region
      $region33: #{tpu_custom_call.1} parent=5 // pred_check
        %p397 = pneg %p396
      $region34: #{tpu_custom_call.1} parent=5 // pred_check_branch
        %399 = sbr.rel (%p397) target = $region36
      $region35: #{tpu_custom_call.1} parent=5 // pred_region
        %s400 = ssub.s32 %s11, 2
        // Predicated region
        $region37: #{tpu_custom_call.1} parent=35 // pred_check
          %p401 = pneg %p87
        $region38: #{tpu_custom_call.1} parent=35 // pred_check_branch
          %403 = sbr.rel (%p401) target = $region40
        $region39: #{tpu_custom_call.1} parent=35 // pred_region
          %s404 = sand.u32 %s72, 1
          %s405 = scalar_lea.sflag [#allocation3], %s404
          %s406 = sand.u32 %s72, 1
          %s407 = smul.addr %s406, 128
          %s408 = scalar_lea.vmem [#allocation2], %s407
          %409 = dma.done %s405, 2048
        $region40: #{tpu_custom_call.1} parent=35 // pred_fallthru
          _
      $region36: #{tpu_custom_call.1} parent=5 // pred_fallthru
        _
    $region6: #{tpu_custom_call.1} parent=1 // loop_footer
      %s15 = sadd.s32 1, %s11
    $region7: #{tpu_custom_call.1} parent=1 // loop_footer_branch
      %10 = sbr.rel target = $region3
    $region8: #{tpu_custom_call.1} parent=1 // loop_exit
      _
    %410 = vsyncpa [#allocation3], 1
    %s411 = scalar_lea.sflag [#allocation3], 1
    %412 = vsyncpa %s411, 1

</llo_original>
